<compile_context>
chip_gen: v7x
topology: tpu7x:2x2x1
jax: 0.10.0
libtpu: 0.0.40
codegen_flags: <defaults>
</compile_context>

<pallas_src>
import functools
import math

import numpy as np

import jax
import jax.numpy as jnp
from jax import lax
from jax.experimental import pallas as pl
from jax.experimental.pallas import tpu as pltpu

_LOG_2PI = math.log(2.0 * math.pi)
_VMEM_LIMIT_BYTES = 48 * 1024 * 1024   # safe on v5e/v6e (128 MiB) and v7x (64 MiB)


# ------------------------------------------------------------------------
# diff / prior / mask sums
# ------------------------------------------------------------------------
def _diff_prior_kernel(dec_ref, u_ref, feats_ref, mu_ref, mask_ref,
                       diff_acc, prior_acc, mask_acc,
                       *, total_t, n_blk, tile_t, need_mask):
    i = pl.program_id(0)          # parallel slice (megacore on v7x)
    j = pl.program_id(1)          # T-block within the slice (reduction axis)

    @pl.when(j == 0)
    def _init():
        diff_acc[...] = jnp.zeros_like(diff_acc)
        prior_acc[...] = jnp.zeros_like(prior_acc)
        mask_acc[...] = jnp.zeros_like(mask_acc)

    dec = dec_ref[...].astype(jnp.float32)
    u = u_ref[...].astype(jnp.float32)
    feats = feats_ref[...].astype(jnp.float32)
    mu = mu_ref[...].astype(jnp.float32)
    m = mask_ref[...].astype(jnp.float32)            # (B, 1, tile_t)

    d = dec - u
    dd = d * d                                       # (B, C, tile_t)
    p = feats - mu
    pp = p * p                                       # (B, C, tile_t)

    if need_mask:
        # Mask the (undefined) tail of a partial last tile.
        t0 = (i * n_blk + j) * tile_t
        lane = lax.broadcasted_iota(jnp.int32, (1, 1, tile_t), 2)
        valid = (t0 + lane) < total_t
        dd = jnp.where(valid, dd, 0.0)
        pp = jnp.where(valid, pp, 0.0)
        m = jnp.where(valid, m, 0.0)

    # Pure-VPU accumulation into the resident output blocks (reduce over B only).
    diff_acc[...] += jnp.sum(dd, axis=0, keepdims=True)        # (1, C, tile_t)
    prior_acc[...] += jnp.sum(pp * m, axis=0, keepdims=True)   # (1, C, tile_t)
    mask_acc[...] += jnp.sum(m, axis=0, keepdims=True)         # (1, 1, tile_t)


def diff_prior_sums(dec, u, feats, mu_y, mask, tile_t_max=512):
    """Returns scalars (sum((dec-u)^2), sum((feats-mu)^2*mask), sum(mask))."""
    B, C, T = dec.shape
    tile_t = T if T <= tile_t_max else tile_t_max          # tile_t_max is a mult. of 128
    nb_total = pl.cdiv(T, tile_t)
    # 2-way split across TensorCores (v7x) when it divides evenly; otherwise 1.
    n_par = 2 if (nb_total >= 2 and nb_total % 2 == 0) else 1
    n_blk = nb_total // n_par
    need_mask = (nb_total * tile_t) != T

    kernel = functools.partial(_diff_prior_kernel, total_t=T, n_blk=n_blk,
                               tile_t=tile_t, need_mask=need_mask)

    feat_spec = pl.BlockSpec((B, C, tile_t), lambda i, j: (0, 0, i * n_blk + j))
    mask_spec = pl.BlockSpec((B, 1, tile_t), lambda i, j: (0, 0, i * n_blk + j))
    acc_spec = pl.BlockSpec((1, C, tile_t), lambda i, j: (i, 0, 0))
    macc_spec = pl.BlockSpec((1, 1, tile_t), lambda i, j: (i, 0, 0))

    d_acc, p_acc, m_acc = pl.pallas_call(
        kernel,
        out_shape=(jax.ShapeDtypeStruct((n_par, C, tile_t), jnp.float32),
                   jax.ShapeDtypeStruct((n_par, C, tile_t), jnp.float32),
                   jax.ShapeDtypeStruct((n_par, 1, tile_t), jnp.float32)),
        grid=(n_par, n_blk),
        in_specs=[feat_spec, feat_spec, feat_spec, feat_spec, mask_spec],
        out_specs=(acc_spec, acc_spec, macc_spec),
        compiler_params=pltpu.CompilerParams(
            dimension_semantics=("parallel", "arbitrary"),
            vmem_limit_bytes=_VMEM_LIMIT_BYTES),
    )(dec, u, feats, mu_y, mask)

    return jnp.sum(d_acc), jnp.sum(p_acc), jnp.sum(m_acc)


# ------------------------------------------------------------------------
# Binarization loss sums (tiled over T_out, fully parallel)
# ------------------------------------------------------------------------
def _bin_kernel(hard_ref, soft_ref, log_ref, hsum_ref,
                *, total_rows, tile_rows, need_mask):
    j = pl.program_id(0)
    h = hard_ref[...].astype(jnp.float32)            # (B, 1, tile_rows, T_in)
    s = soft_ref[...].astype(jnp.float32)

    if need_mask:
        row = lax.broadcasted_iota(jnp.int32, h.shape, 2)
        valid = (j * tile_rows + row) < total_rows
        h = jnp.where(valid, h, 0.0)

    # attn_hard is (at most) one-hot along T_in, so
    #   sum_k hard*log(clamp(soft)) == log(clamp(sum_k hard*soft))  (rows with a 1)
    # and empty rows contribute 0.  This cuts EUP log count by a factor of T_in.
    p = jnp.sum(h * s, axis=-1)                      # (B, 1, tile_rows)
    h_row = jnp.sum(h, axis=-1)                      # (B, 1, tile_rows)
    log_ref[...] = jnp.where(h_row > 0.5, jnp.log(jnp.maximum(p, 1e-12)), 0.0)
    hsum_ref[...] = h_row


def bin_loss_sums(hard, soft, tile_rows_max=256, tile_rows=128):
    """Returns (sum(hard*log(clamp(soft))), sum(hard))."""
    if hard.dtype == jnp.bool_:
        hard = hard.astype(jnp.float32)
    if soft.dtype == jnp.bool_:
        soft = soft.astype(jnp.float32)
    B, _, T_out, T_in = hard.shape
    if T_out <= tile_rows_max:
        tile = T_out
        n_blk = 1
    else:
        tile = tile_rows                              # multiple of 128 (and of 8)
        n_blk = pl.cdiv(T_out, tile)
    need_mask = (n_blk * tile) != T_out

    kernel = functools.partial(_bin_kernel, total_rows=T_out, tile_rows=tile,
                               need_mask=need_mask)
    in_spec = pl.BlockSpec((B, 1, tile, T_in), lambda j: (0, 0, j, 0))
    out_spec = pl.BlockSpec((B, 1, tile), lambda j: (0, 0, j))

    log_map, hsum_map = pl.pallas_call(
        kernel,
        out_shape=(jax.ShapeDtypeStruct((B, 1, n_blk * tile), jnp.float32),
                   jax.ShapeDtypeStruct((B, 1, n_blk * tile), jnp.float32)),
        grid=(n_blk,),
        in_specs=[in_spec, in_spec],
        out_specs=(out_spec, out_spec),
        compiler_params=pltpu.CompilerParams(
            dimension_semantics=("parallel",),
            vmem_limit_bytes=_VMEM_LIMIT_BYTES),
    )(hard, soft)

    return jnp.sum(log_map), jnp.sum(hsum_map)


# ------------------------------------------------------------------------
# Duration MSE + CVAE KL terms fused into one small Pallas call
# ------------------------------------------------------------------------
def _small_losses_kernel(pred_ref, tgt_ref, pad_ref,
                         mu_a_ref, lv_a_ref, mu_s_ref, lv_s_ref, out_ref):
    pred = pred_ref[...].astype(jnp.float32)
    tgt = tgt_ref[...].astype(jnp.float32) * pad_ref[...].astype(jnp.float32)
    d = pred - jnp.log(tgt + 1.0)
    out_ref[0] = jnp.sum(d * d)

    mu_a = mu_a_ref[...].astype(jnp.float32)
    lv_a = lv_a_ref[...].astype(jnp.float32)
    out_ref[1] = jnp.sum(-0.5 * (1.0 + lv_a - mu_a * mu_a - jnp.exp(lv_a)))

    mu_s = mu_s_ref[...].astype(jnp.float32)
    lv_s = lv_s_ref[...].astype(jnp.float32)
    out_ref[2] = jnp.sum(-0.5 * (1.0 + lv_s - mu_s * mu_s - jnp.exp(lv_s)))


def small_losses_sums(log_dur_pred, dur_tgt, nonpadding, mu_acc, lv_acc, mu_spk, lv_spk):
    """f32[3] = [sum((pred-log(tgt*mask+1))^2), kl_sum_acc, kl_sum_spk]."""
    return pl.pallas_call(
        _small_losses_kernel,
        out_shape=jax.ShapeDtypeStruct((3,), jnp.float32),
        in_specs=[pl.BlockSpec(memory_space=pltpu.MemorySpace.VMEM)] * 7,
        out_specs=pl.BlockSpec(memory_space=pltpu.MemorySpace.SMEM),
    )(log_dur_pred, dur_tgt, nonpadding, mu_acc, lv_acc, mu_spk, lv_spk)


# ------------------------------------------------------------------------
# ForwardSum (CTC) alignment loss -- sequential DP, plain JAX
# TODO(synk): per-sample variable-length CTC forward recursion kept in plain
#             JAX (lax.scan); a Pallas port (states on lanes, pltpu.roll shifts)
#             is possible but not implemented here.
# ------------------------------------------------------------------------
def forward_sum_loss(attn_logprob, in_lens, out_lens, blank_logprob=-1.0):
    # attn_logprob: (B, 1, T_out, T_in); in_lens = text (key) lens, out_lens = frame lens.
    B, _, T_out, T_in = attn_logprob.shape
    NEG = -1e30
    lp = attn_logprob[:, 0]                                          # (B, T_out, T_in)
    lp = jnp.pad(lp, ((0, 0), (0, 0), (1, 0)), constant_values=blank_logprob)
    K1 = T_in + 1
    key_idx = jnp.arange(K1)

    S = 2 * T_in + 1                                                 # extended CTC states
    s_idx = jnp.arange(S)
    is_label = (s_idx % 2) == 1
    symbol = jnp.where(is_label, (s_idx + 1) // 2, 0)

    def one(lp_b, klen, qlen):
        klen = klen.astype(jnp.int32)
        qlen = qlen.astype(jnp.int32)
        valid_key = key_idx <= klen                                  # blank + klen labels
        lp_b = jnp.where(valid_key[None, :], lp_b, NEG)
        lp_b = jax.nn.log_softmax(lp_b, axis=-1)
        lp_b = jnp.where(valid_key[None, :], lp_b, NEG)

        valid_state = s_idx < (2 * klen + 1)

        # Hoist the per-step gather out of the scan.
        emit_all = lp_b[:, symbol]                                   # (T_out, S)
        emit_all = jnp.where(valid_state[None, :], emit_all, NEG)

        alpha0 = jnp.full((S,), NEG, jnp.float32)
        alpha0 = alpha0.at[0].set(emit_all[0, 0])
        alpha0 = alpha0.at[1].set(emit_all[0, 1])
        alpha0 = jnp.where(valid_state, alpha0, NEG)

        t_idx = jnp.arange(1, T_out)
        active = t_idx < qlen

        def step_fn(alpha, x):
            emit, act = x
            a1 = jnp.pad(alpha[:-1], (1, 0), constant_values=NEG)
            a2 = jnp.pad(alpha[:-2], (2, 0), constant_values=NEG)
            comb = jnp.logaddexp(alpha, a1)
            comb = jnp.where(is_label, jnp.logaddexp(comb, a2), comb)
            new_alpha = comb + emit
            new_alpha = jnp.where(valid_state, new_alpha, NEG)
            new_alpha = jnp.where(act, new_alpha, alpha)
            return new_alpha, None

        alpha, _ = lax.scan(step_fn, alpha0, (emit_all[1:], active))
        end = jnp.logaddexp(alpha[2 * klen], alpha[jnp.maximum(2 * klen - 1, 0)])
        nll = -end / klen.astype(jnp.float32)                        # CTCLoss reduction='mean'
        return jnp.where(jnp.isfinite(nll), nll, 0.0)                # zero_infinity=True

    losses = jax.vmap(one)(lp, in_lens, out_lens)
    return jnp.mean(losses)


# ------------------------------------------------------------------------
# Schedules / helpers
# ------------------------------------------------------------------------
def linear_buildup(n_iter, n_stop, n_up, start, stop):
    # TODO(synk): linear_buildup is not defined in the reference source; using a
    # linear ramp start->stop over n_up steps, held at `stop` from n_stop on.
    steps = np.arange(n_iter, dtype=np.float32)
    vals = start + (stop - start) * np.clip(steps / max(n_up, 1), 0.0, 1.0)
    vals = np.where(steps >= n_stop, stop, vals)
    return vals.astype(np.float32)


# ------------------------------------------------------------------------
# Loss module
# ------------------------------------------------------------------------
class MatchaTTSLossPallas:
    """JAX/Pallas port of MatchaTTSLoss.forward."""

    def __init__(self, n_iter, config, is_finetune=False):
        self.config = config
        self.n_channels = config["n_channels"]
        self.linbuild = config["linbuild"]
        if is_finetune:
            self.L = 0.0005
        else:
            self.L = linear_buildup(
                n_iter=n_iter,
                n_stop=self.linbuild["n_stop"],
                n_up=self.linbuild["n_up"],
                start=self.linbuild["start"],
                stop=self.linbuild["stop"],
            )
        self.binarization_loss_enable_steps = config["binarization_loss_enable_steps"]
        self.binarization_loss_warmup_steps = config["binarization_loss_warmup_steps"]

    # -- forward ------------------------------------------------------------
    def __call__(self, predictions, targets, is_joint=False, step=None, **kwargs):
        (dec_outs, u, mu_y, text_mask, feats_mask, feats_lengths,
         duration_targets, log_duration_predictions, attn_outs, accent_probs) = predictions
        feats, text_lengths = targets
        text_nonpadding = jnp.logical_not(text_mask).astype(jnp.float32)  # ~text_mask

        mask = feats_mask if is_joint is False else None
        if mask is None:
            mask = jnp.ones((dec_outs.shape[0], 1, dec_outs.shape[-1]), jnp.float32)
        mask = mask.astype(jnp.float32)

        # diff + prior (heavy (B, C, T) tensors -> one fused Pallas kernel)
        diff_sq, prior_sq, mask_sum = diff_prior_sums(dec_outs, u, feats, mu_y, mask)
        C = feats.shape[1]
        losses = {}
        losses["diff"] = diff_sq / (mask_sum * u.shape[1])
        prior_total = 0.5 * prior_sq + 0.5 * _LOG_2PI * C * mask_sum
        losses["prior"] = prior_total / (mask_sum * self.n_channels)

        if step is not None and attn_outs is not None:
            attn_soft, attn_hard, _, attn_logprob = attn_outs

            # CVAE KL + duration MSE (tiny tensors -> single fused Pallas call)
            # TODO(synk): kl_loss not defined in reference source; using standard
            #             VAE KL, summed over dims and averaged over batch.
            x_mu_acc, x_lv_acc, x_mu_spk, x_lv_spk = accent_probs
            small = small_losses_sums(
                log_duration_predictions, duration_targets, text_nonpadding,
                x_mu_acc, x_lv_acc, x_mu_spk, x_lv_spk)
            L = self.L if isinstance(self.L, float) else float(self.L[step])
            batch = x_mu_acc.shape[0]
            losses["cvae"] = L * (small[1] / batch) + L * (small[2] / batch)
            losses["dur"] = small[0] / float(log_duration_predictions.size)  # F.mse_loss mean

            # alignment losses
            losses["ctc"] = forward_sum_loss(attn_logprob, text_lengths, feats_lengths)
            if step < self.binarization_loss_enable_steps:
                bin_w = 0.0
            else:
                bin_w = min(
                    (step - self.binarization_loss_enable_steps)
                    / self.binarization_loss_warmup_steps,
                    1.0,
                ) * 1.0
            log_sum, hard_sum = bin_loss_sums(attn_hard, attn_soft)
            losses["bin"] = (-log_sum / hard_sum) * bin_w
        return losses


# ------------------------------------------------------------------------
# Demo
# ------------------------------------------------------------------------
if __name__ == "__main__":
    key = jax.random.PRNGKey(0)
    B, C, T, T_text, D = 2, 4, 16, 8, 32
    ks = jax.random.split(key, 12)

    dec_outs = jax.random.normal(ks[0], (B, C, T), jnp.float32)
    u = jax.random.normal(ks[1], (B, C, T), jnp.float32)
    mu_y = jax.random.normal(ks[2], (B, C, T), jnp.float32)
    feats = jax.random.normal(ks[3], (B, C, T), jnp.float32)

    feats_lengths = jnp.array([16, 12], jnp.int32)
    text_lengths = jnp.array([8, 6], jnp.int32)
    feats_mask = (jnp.arange(T)[None, :] < feats_lengths[:, None]).astype(jnp.float32)[:, None, :]
    text_pad_mask = jnp.arange(T_text)[None, :] >= text_lengths[:, None]     # True = padding

    duration_targets = jax.random.randint(ks[4], (B, T_text), 1, 5).astype(jnp.float32)
    log_duration_predictions = 0.1 * jax.random.normal(ks[5], (B, T_text), jnp.float32)

    attn_logprob = jax.random.normal(ks[6], (B, 1, T, T_text), jnp.float32)
    attn_soft = jax.nn.softmax(attn_logprob, axis=-1)
    attn_hard = jax.nn.one_hot(jnp.argmax(attn_soft, axis=-1), T_text, dtype=jnp.float32)
    attn_outs = (attn_soft, attn_hard, None, attn_logprob)

    accent_probs = (
        0.1 * jax.random.normal(ks[7], (B, D), jnp.float32),
        0.1 * jax.random.normal(ks[8], (B, D), jnp.float32),
        0.1 * jax.random.normal(ks[9], (B, D), jnp.float32),
        0.1 * jax.random.normal(ks[10], (B, D), jnp.float32),
    )

    config = {
        "n_channels": C,
        "binarization_loss_enable_steps": 2,
        "binarization_loss_warmup_steps": 10,
        "linbuild": {"n_stop": 50, "n_up": 20, "start": 0.0, "stop": 1e-4},
    }

    loss_mod = MatchaTTSLossPallas(n_iter=100, config=config, is_finetune=False)
    predictions = (dec_outs, u, mu_y, text_pad_mask, feats_mask, feats_lengths,
                   duration_targets, log_duration_predictions, attn_outs, accent_probs)
    targets = (feats, text_lengths)

    losses = loss_mod(predictions, targets, is_joint=False, step=5)
    for v in jax.tree_util.tree_leaves(losses):
        jax.block_until_ready(v)
    print("KERNEL_OK")
</pallas_src>

<mosaic_0001>
module attributes {stable_mosaic.version = 11 : i64} {
  func.func @_diff_prior_kernel(%arg0: i32, %arg1: i32, %arg2: memref<2x4x16xf32, #tpu.memory_space<vmem>>, %arg3: memref<2x4x16xf32, #tpu.memory_space<vmem>>, %arg4: memref<2x4x16xf32, #tpu.memory_space<vmem>>, %arg5: memref<2x4x16xf32, #tpu.memory_space<vmem>>, %arg6: memref<2x1x16xf32, #tpu.memory_space<vmem>>, %arg7: memref<1x4x16xf32, #tpu.memory_space<vmem>>, %arg8: memref<1x4x16xf32, #tpu.memory_space<vmem>>, %arg9: memref<1x1x16xf32, #tpu.memory_space<vmem>>) attributes {dimension_semantics = [#tpu.dimension_semantics<parallel>, #tpu.dimension_semantics<arbitrary>], iteration_bounds = array<i64: 1, 1>, scalar_prefetch = 0 : i64, scratch_operands = 0 : i64, tpu.core_type = #tpu.core_type<tc>, window_params = [{transform_indices = @transform_0, window_bounds = array<i64: 2, 4, 16>}, {transform_indices = @transform_1, window_bounds = array<i64: 2, 4, 16>}, {transform_indices = @transform_2, window_bounds = array<i64: 2, 4, 16>}, {transform_indices = @transform_3, window_bounds = array<i64: 2, 4, 16>}, {transform_indices = @transform_4, window_bounds = array<i64: 2, 1, 16>}, {transform_indices = @transform_5, window_bounds = array<i64: 1, 4, 16>}, {transform_indices = @transform_6, window_bounds = array<i64: 1, 4, 16>}, {transform_indices = @transform_7, window_bounds = array<i64: 1, 1, 16>}]} {
    %c0_i32 = arith.constant 0 : i32
    %0 = arith.cmpi eq, %arg1, %c0_i32 : i32
    %1 = arith.extui %0 : i1 to i32
    %c0_i32_0 = arith.constant 0 : i32
    %2 = arith.cmpi ne, %1, %c0_i32_0 : i32
    scf.if %2 {
      %cst_35 = arith.constant 0.000000e+00 : f32
      %29 = vector.broadcast %cst_35 : f32 to vector<1x4x16xf32>
      %c0_36 = arith.constant 0 : index
      %c0_37 = arith.constant 0 : index
      %c0_38 = arith.constant 0 : index
      %30 = vector.load %arg7[%c0_36, %c0_37, %c0_38] : memref<1x4x16xf32, #tpu.memory_space<vmem>>, vector<1x4x16xf32>
      tpu.vector_store %arg7[%c0_36, %c0_37, %c0_38], %29 {strides = array<i32>} : memref<1x4x16xf32, #tpu.memory_space<vmem>>, vector<1x4x16xf32>,
      %cst_39 = arith.constant 0.000000e+00 : f32
      %31 = vector.broadcast %cst_39 : f32 to vector<1x4x16xf32>
      %c0_40 = arith.constant 0 : index
      %c0_41 = arith.constant 0 : index
      %c0_42 = arith.constant 0 : index
      %32 = vector.load %arg8[%c0_40, %c0_41, %c0_42] : memref<1x4x16xf32, #tpu.memory_space<vmem>>, vector<1x4x16xf32>
      tpu.vector_store %arg8[%c0_40, %c0_41, %c0_42], %31 {strides = array<i32>} : memref<1x4x16xf32, #tpu.memory_space<vmem>>, vector<1x4x16xf32>,
      %cst_43 = arith.constant 0.000000e+00 : f32
      %33 = vector.broadcast %cst_43 : f32 to vector<1x1x16xf32>
      %c0_44 = arith.constant 0 : index
      %c0_45 = arith.constant 0 : index
      %c0_46 = arith.constant 0 : index
      %34 = vector.load %arg9[%c0_44, %c0_45, %c0_46] : memref<1x1x16xf32, #tpu.memory_space<vmem>>, vector<1x1x16xf32>
      tpu.vector_store %arg9[%c0_44, %c0_45, %c0_46], %33 {strides = array<i32>} : memref<1x1x16xf32, #tpu.memory_space<vmem>>, vector<1x1x16xf32>,
    } else {
    }
    %c0 = arith.constant 0 : index
    %c0_1 = arith.constant 0 : index
    %c0_2 = arith.constant 0 : index
    %3 = vector.load %arg2[%c0, %c0_1, %c0_2] : memref<2x4x16xf32, #tpu.memory_space<vmem>>, vector<2x4x16xf32>
    %c0_3 = arith.constant 0 : index
    %c0_4 = arith.constant 0 : index
    %c0_5 = arith.constant 0 : index
    %4 = vector.load %arg3[%c0_3, %c0_4, %c0_5] : memref<2x4x16xf32, #tpu.memory_space<vmem>>, vector<2x4x16xf32>
    %c0_6 = arith.constant 0 : index
    %c0_7 = arith.constant 0 : index
    %c0_8 = arith.constant 0 : index
    %5 = vector.load %arg4[%c0_6, %c0_7, %c0_8] : memref<2x4x16xf32, #tpu.memory_space<vmem>>, vector<2x4x16xf32>
    %c0_9 = arith.constant 0 : index
    %c0_10 = arith.constant 0 : index
    %c0_11 = arith.constant 0 : index
    %6 = vector.load %arg5[%c0_9, %c0_10, %c0_11] : memref<2x4x16xf32, #tpu.memory_space<vmem>>, vector<2x4x16xf32>
    %c0_12 = arith.constant 0 : index
    %c0_13 = arith.constant 0 : index
    %c0_14 = arith.constant 0 : index
    %7 = vector.load %arg6[%c0_12, %c0_13, %c0_14] : memref<2x1x16xf32, #tpu.memory_space<vmem>>, vector<2x1x16xf32>
    %8 = arith.subf %3, %4 : vector<2x4x16xf32>
    %9 = arith.mulf %8, %8 : vector<2x4x16xf32>
    %10 = arith.subf %5, %6 : vector<2x4x16xf32>
    %11 = arith.mulf %10, %10 : vector<2x4x16xf32>
    %c0_15 = arith.constant 0 : index
    %c0_16 = arith.constant 0 : index
    %c0_17 = arith.constant 0 : index
    %12 = vector.load %arg7[%c0_15, %c0_16, %c0_17] : memref<1x4x16xf32, #tpu.memory_space<vmem>>, vector<1x4x16xf32>
    %cst = arith.constant dense<0.000000e+00> : vector<4x16xf32>
    %13 = vector.multi_reduction <add>, %9, %cst [0] : vector<2x4x16xf32> to vector<4x16xf32>
    %14 = vector.shape_cast %13 : vector<4x16xf32> to vector<1x4x16xf32>
    %15 = arith.addf %12, %14 : vector<1x4x16xf32>
    %c0_18 = arith.constant 0 : index
    %c0_19 = arith.constant 0 : index
    %c0_20 = arith.constant 0 : index
    %16 = vector.load %arg7[%c0_18, %c0_19, %c0_20] : memref<1x4x16xf32, #tpu.memory_space<vmem>>, vector<1x4x16xf32>
    tpu.vector_store %arg7[%c0_18, %c0_19, %c0_20], %15 {strides = array<i32>} : memref<1x4x16xf32, #tpu.memory_space<vmem>>, vector<1x4x16xf32>,
    %c0_21 = arith.constant 0 : index
    %c0_22 = arith.constant 0 : index
    %c0_23 = arith.constant 0 : index
    %17 = vector.load %arg8[%c0_21, %c0_22, %c0_23] : memref<1x4x16xf32, #tpu.memory_space<vmem>>, vector<1x4x16xf32>
    %18 = vector.broadcast %7 : vector<2x1x16xf32> to vector<2x4x16xf32>
    %19 = arith.mulf %11, %18 : vector<2x4x16xf32>
    %cst_24 = arith.constant dense<0.000000e+00> : vector<4x16xf32>
    %20 = vector.multi_reduction <add>, %19, %cst_24 [0] : vector<2x4x16xf32> to vector<4x16xf32>
    %21 = vector.shape_cast %20 : vector<4x16xf32> to vector<1x4x16xf32>
    %22 = arith.addf %17, %21 : vector<1x4x16xf32>
    %c0_25 = arith.constant 0 : index
    %c0_26 = arith.constant 0 : index
    %c0_27 = arith.constant 0 : index
    %23 = vector.load %arg8[%c0_25, %c0_26, %c0_27] : memref<1x4x16xf32, #tpu.memory_space<vmem>>, vector<1x4x16xf32>
    tpu.vector_store %arg8[%c0_25, %c0_26, %c0_27], %22 {strides = array<i32>} : memref<1x4x16xf32, #tpu.memory_space<vmem>>, vector<1x4x16xf32>,
    %c0_28 = arith.constant 0 : index
    %c0_29 = arith.constant 0 : index
    %c0_30 = arith.constant 0 : index
    %24 = vector.load %arg9[%c0_28, %c0_29, %c0_30] : memref<1x1x16xf32, #tpu.memory_space<vmem>>, vector<1x1x16xf32>
    %cst_31 = arith.constant dense<0.000000e+00> : vector<1x16xf32>
    %25 = vector.multi_reduction <add>, %7, %cst_31 [0] : vector<2x1x16xf32> to vector<1x16xf32>
    %26 = vector.shape_cast %25 : vector<1x16xf32> to vector<1x1x16xf32>
    %27 = arith.addf %24, %26 : vector<1x1x16xf32>
    %c0_32 = arith.constant 0 : index
    %c0_33 = arith.constant 0 : index
    %c0_34 = arith.constant 0 : index
    %28 = vector.load %arg9[%c0_32, %c0_33, %c0_34] : memref<1x1x16xf32, #tpu.memory_space<vmem>>, vector<1x1x16xf32>
    tpu.vector_store %arg9[%c0_32, %c0_33, %c0_34], %27 {strides = array<i32>} : memref<1x1x16xf32, #tpu.memory_space<vmem>>, vector<1x1x16xf32>,
    return
  }
  func.func @transform_0(%arg0: i32, %arg1: i32) -> (i32, i32, i32) {
    %c1_i32 = arith.constant 1 : i32
    %0 = arith.muli %arg0, %c1_i32 : i32
    %1 = arith.addi %0, %arg1 : i32
    %c0_i32 = arith.constant 0 : i32
    %c0_i32_0 = arith.constant 0 : i32
    %c0_i32_1 = arith.constant 0 : i32
    return %c0_i32, %c0_i32_0, %1 : i32, i32, i32
  }
  func.func @transform_1(%arg0: i32, %arg1: i32) -> (i32, i32, i32) {
    %c1_i32 = arith.constant 1 : i32
    %0 = arith.muli %arg0, %c1_i32 : i32
    %1 = arith.addi %0, %arg1 : i32
    %c0_i32 = arith.constant 0 : i32
    %c0_i32_0 = arith.constant 0 : i32
    %c0_i32_1 = arith.constant 0 : i32
    return %c0_i32, %c0_i32_0, %1 : i32, i32, i32
  }
  func.func @transform_2(%arg0: i32, %arg1: i32) -> (i32, i32, i32) {
    %c1_i32 = arith.constant 1 : i32
    %0 = arith.muli %arg0, %c1_i32 : i32
    %1 = arith.addi %0, %arg1 : i32
    %c0_i32 = arith.constant 0 : i32
    %c0_i32_0 = arith.constant 0 : i32
    %c0_i32_1 = arith.constant 0 : i32
    return %c0_i32, %c0_i32_0, %1 : i32, i32, i32
  }
  func.func @transform_3(%arg0: i32, %arg1: i32) -> (i32, i32, i32) {
    %c1_i32 = arith.constant 1 : i32
    %0 = arith.muli %arg0, %c1_i32 : i32
    %1 = arith.addi %0, %arg1 : i32
    %c0_i32 = arith.constant 0 : i32
    %c0_i32_0 = arith.constant 0 : i32
    %c0_i32_1 = arith.constant 0 : i32
    return %c0_i32, %c0_i32_0, %1 : i32, i32, i32
  }
  func.func @transform_4(%arg0: i32, %arg1: i32) -> (i32, i32, i32) {
    %c1_i32 = arith.constant 1 : i32
    %0 = arith.muli %arg0, %c1_i32 : i32
    %1 = arith.addi %0, %arg1 : i32
    %c0_i32 = arith.constant 0 : i32
    %c0_i32_0 = arith.constant 0 : i32
    %c0_i32_1 = arith.constant 0 : i32
    return %c0_i32, %c0_i32_0, %1 : i32, i32, i32
  }
  func.func @transform_5(%arg0: i32, %arg1: i32) -> (i32, i32, i32) {
    %c0_i32 = arith.constant 0 : i32
    %c0_i32_0 = arith.constant 0 : i32
    %c0_i32_1 = arith.constant 0 : i32
    return %arg0, %c0_i32, %c0_i32_0 : i32, i32, i32
  }
  func.func @transform_6(%arg0: i32, %arg1: i32) -> (i32, i32, i32) {
    %c0_i32 = arith.constant 0 : i32
    %c0_i32_0 = arith.constant 0 : i32
    %c0_i32_1 = arith.constant 0 : i32
    return %arg0, %c0_i32, %c0_i32_0 : i32, i32, i32
  }
  func.func @transform_7(%arg0: i32, %arg1: i32) -> (i32, i32, i32) {
    %c0_i32 = arith.constant 0 : i32
    %c0_i32_0 = arith.constant 0 : i32
    %c0_i32_1 = arith.constant 0 : i32
    return %arg0, %c0_i32, %c0_i32_0 : i32, i32, i32
  }
}

</mosaic_0001>

<llo_original>
// kernel: tpu_custom_call.1
$region0: #{tpu_custom_call.1}
  #allocation0 [shape = 'u32[]', space=smem, size = 0x4, offset = 0x4, fixed_abs, tag = 'smem constant byte address 0x4 - core index']
  #allocation1 [shape = 'u32[144,128]{1,0:T(1,128)}', space=vmem, size = 0x12000, scoped, tag = 'internal scratch']
  %s0 = inlined_call_operand.hbm [shape: f32[2,4,16], index: 0, kind: input, shape index: {}]
  %s1 = inlined_call_operand.hbm [shape: f32[2,4,16], index: 1, kind: input, shape index: {}]
  %s2 = inlined_call_operand.hbm [shape: f32[2,4,16], index: 2, kind: input, shape index: {}]
  %s3 = inlined_call_operand.vmem [shape: f32[2,4,16], index: 3, kind: input, shape index: {}]
  %s4 = inlined_call_operand.vmem [shape: f32[2,1,16], index: 4, kind: input, shape index: {}]
  %s5 = inlined_call_operand.hbm [shape: f32[1,4,16], index: 5, kind: output, shape index: {0}]
  %s6 = inlined_call_operand.hbm [shape: f32[1,4,16], index: 6, kind: output, shape index: {1}]
  %s7 = inlined_call_operand.hbm [shape: f32[1,1,16], index: 7, kind: output, shape index: {2}]
  %8 = xla_tuple %s5, %s6, %s7
  %s9 = sld [smem:[#allocation0]]
  $region62: #{tpu_custom_call.1} parent=0
    _
  %s11 = ssub.s32 1, %s9
  %s12 = scalar_select 0, %s11, %s9
  $region1: #{tpu_custom_call.1} parent=0
    #allocation2 [shape = 'u8[4096]{0}', space=vmem, size = 0x1000, scoped, tag = 'input window, operand 0, single buffered']
    #allocation3 [shape = 's32[1]{0}', space=sflag, size = 0x4, scoped, tag = 'scoped memory for tpu_custom_call.1']
    #allocation4 [shape = 's32[1]{0}', space=sflag, size = 0x4, scoped, tag = 'scoped memory for tpu_custom_call.1']
    #allocation5 [shape = 'u8[4096]{0}', space=vmem, size = 0x1000, scoped, tag = 'input window, operand 1, single buffered']
    #allocation6 [shape = 's32[1]{0}', space=sflag, size = 0x4, scoped, tag = 'scoped memory for tpu_custom_call.1']
    #allocation7 [shape = 'u8[4096]{0}', space=vmem, size = 0x1000, scoped, tag = 'input window, operand 2, single buffered']
    #allocation8 [shape = 'u8[2048]{0}', space=vmem, size = 0x800, scoped, tag = 'output window, operand 0, single buffered']
    #allocation9 [shape = 'u8[2048]{0}', space=vmem, size = 0x800, scoped, tag = 'output window, operand 1, single buffered']
    #allocation10 [shape = 's32[1]{0}', space=sflag, size = 0x4, scoped, tag = 'scoped memory for tpu_custom_call.1']
    #allocation11 [shape = 'u8[512]{0}', space=vmem, size = 0x400, scoped, tag = 'output window, operand 2, single buffered']
    %13 = vsyncpa [#allocation3], 0
    %14 = vsyncpa [#allocation6], 0
    %15 = vsyncpa [#allocation4], 0
    %16 = vsyncpa [#allocation10], 0
    // Predicated region
    $region2: #{tpu_custom_call.1} parent=1 // pred_check
      _
    $region3: #{tpu_custom_call.1} parent=1 // pred_check_branch
      %18 = sbr.rel (0) target = $region5
    $region4: #{tpu_custom_call.1} parent=1 // pred_region
      %s19 = sadd.s32 0, 0
      %s21 = ssub.s32 128, 128
      %22 = vsyncadd [#allocation3], %s21
      %s23 = smul.addr %s19, 64
      %s24 = scalar_lea.hbm %s0, %s23
      %s25 = sshll.u32 [#allocation2], 4
      %s26 = int_to_ptr.vmem [resolvable:$true] %s25
      %31 = dma.hbm_to_vmem [thread:$0]  %s24, 128, %s26, [#allocation3], 64, 64, 4
    $region5: #{tpu_custom_call.1} parent=1 // pred_fallthru
      _
    // Predicated region
    $region6: #{tpu_custom_call.1} parent=1 // pred_check
      _
    $region7: #{tpu_custom_call.1} parent=1 // pred_check_branch
      %33 = sbr.rel (0) target = $region9
    $region8: #{tpu_custom_call.1} parent=1 // pred_region
      %s34 = sadd.s32 0, 0
      %s36 = ssub.s32 128, 128
      %37 = vsyncadd [#allocation6], %s36
      %s38 = smul.addr %s34, 64
      %s39 = scalar_lea.hbm %s1, %s38
      %s40 = sshll.u32 [#allocation5], 4
      %s41 = int_to_ptr.vmem [resolvable:$true] %s40
      %46 = dma.hbm_to_vmem [thread:$0]  %s39, 128, %s41, [#allocation6], 64, 64, 4
    $region9: #{tpu_custom_call.1} parent=1 // pred_fallthru
      _
    // Predicated region
    $region10: #{tpu_custom_call.1} parent=1 // pred_check
      _
    $region11: #{tpu_custom_call.1} parent=1 // pred_check_branch
      %48 = sbr.rel (0) target = $region13
    $region12: #{tpu_custom_call.1} parent=1 // pred_region
      %s49 = sadd.s32 0, 0
      %s51 = ssub.s32 128, 128
      %52 = vsyncadd [#allocation6], %s51
      %s53 = smul.addr %s49, 64
      %s54 = scalar_lea.hbm %s2, %s53
      %s55 = sshll.u32 [#allocation7], 4
      %s56 = int_to_ptr.vmem [resolvable:$true] %s55
      %61 = dma.hbm_to_vmem [thread:$0]  %s54, 128, %s56, [#allocation6], 64, 64, 4
    $region13: #{tpu_custom_call.1} parent=1 // pred_fallthru
      _
    // Predicated region
    $region14: #{tpu_custom_call.1} parent=1 // pred_check
      _
    $region15: #{tpu_custom_call.1} parent=1 // pred_check_branch
      %63 = sbr.rel (0) target = $region17
    $region16: #{tpu_custom_call.1} parent=1 // pred_region
      %s64 = sadd.s32 0, 0
      %p65 = scmp.lt.s32.totalorder %s64, 0
      %s66 = scalar_select %p65, %s64, 0
      %s67 = smul.addr %s66, 4
      %s68 = scalar_lea.vmem %s3, %s67
      %s69 = sadd.s32 0, 0
    $region17: #{tpu_custom_call.1} parent=1 // pred_fallthru
      _
    // Predicated region
    $region18: #{tpu_custom_call.1} parent=1 // pred_check
      _
    $region19: #{tpu_custom_call.1} parent=1 // pred_check_branch
      %71 = sbr.rel (0) target = $region21
    $region20: #{tpu_custom_call.1} parent=1 // pred_region
      %s72 = sadd.s32 0, 0
      %p73 = scmp.lt.s32.totalorder %s72, 0
      %s74 = scalar_select %p73, %s72, 0
      %s75 = scalar_lea.vmem %s4, %s74
      %s76 = sadd.s32 0, 0
    $region21: #{tpu_custom_call.1} parent=1 // pred_fallthru
      _
    // Predicated region
    $region22: #{tpu_custom_call.1} parent=1 // pred_check
      _
    $region23: #{tpu_custom_call.1} parent=1 // pred_check_branch
      %78 = sbr.rel (0) target = $region25
    $region24: #{tpu_custom_call.1} parent=1 // pred_region
      %79 = dma.done [#allocation3], 128
    $region25: #{tpu_custom_call.1} parent=1 // pred_fallthru
      _
    // Predicated region
    $region26: #{tpu_custom_call.1} parent=1 // pred_check
      _
    $region27: #{tpu_custom_call.1} parent=1 // pred_check_branch
      %81 = sbr.rel (0) target = $region29
    $region28: #{tpu_custom_call.1} parent=1 // pred_region
      %82 = dma.done [#allocation6], 128
    $region29: #{tpu_custom_call.1} parent=1 // pred_fallthru
      _
    // Predicated region
    $region30: #{tpu_custom_call.1} parent=1 // pred_check
      _
    $region31: #{tpu_custom_call.1} parent=1 // pred_check_branch
      %84 = sbr.rel (0) target = $region33
    $region32: #{tpu_custom_call.1} parent=1 // pred_region
      %85 = dma.done [#allocation6], 128
    $region33: #{tpu_custom_call.1} parent=1 // pred_fallthru
      _
    %s86 = sadd.s32 0, 0
    %p87 = scmp.lt.s32.totalorder %s86, 0
    %s88 = scalar_select %p87, %s86, 0
    %s89 = smul.addr %s88, 4
    %s90 = scalar_lea.vmem %s3, %s89
    %s91 = sadd.s32 0, 0
    %p92 = scmp.lt.s32.totalorder %s91, 0
    %s93 = scalar_select %p92, %s91, 0
    %s94 = scalar_lea.vmem %s4, %s93
    %s95 = sadd.s32 0, 0
    %s96 = sadd.s32 0, 0
    %s97 = sadd.s32 0, 0
    %s98 = sadd.s32 0, 0
    %p99 = scmp.lt.s32.totalorder %s98, 0
    %s100 = scalar_select %p99, %s98, 0
    %s101 = smul.addr %s100, 4
    %s102 = scalar_lea.vmem %s3, %s101
    %s103 = sadd.s32 0, 0
    %s104 = sadd.s32 0, 0
    %p105 = scmp.lt.s32.totalorder %s104, 0
    %s106 = scalar_select %p105, %s104, 0
    %s107 = scalar_lea.vmem %s4, %s106
    %s108 = sadd.s32 0, 0
    %p109 = scmp.eq.s32.totalorder 0, 0
    // Predicated region
    $region34: #{tpu_custom_call.1} parent=1 // pred_check
      %p110 = pneg %p109
    $region35: #{tpu_custom_call.1} parent=1 // pred_check_branch
      %112 = sbr.rel (%p110) target = $region37
    $region36: #{tpu_custom_call.1} parent=1 // pred_region
      %vm113 = vcmask 125952
      %114 = vst.msk [vmem:[#allocation8] sm:$0xf] %vm113, 0.0
      %115 = vst.msk [vmem:[#allocation9] sm:$0xf] %vm113, 0.0
      %vm116 = vcmask 122880
      %117 = vst.msk [vmem:[#allocation11] sm:$0x1] %vm116, 0.0
    $region37: #{tpu_custom_call.1} parent=1 // pred_fallthru
      _
    %v118 = vld [vmem:[#allocation2] sm:$0xf]
    %v119 = vld [vmem:[#allocation2 + $0x4] sm:$0xf]
    %v120 = vld [vmem:[#allocation5] sm:$0xf]
    %v121 = vld [vmem:[#allocation5 + $0x4] sm:$0xf]
    %v122 = vld [vmem:[#allocation7] sm:$0xf]
    %v123 = vld [vmem:[#allocation7 + $0x4] sm:$0xf]
    %v124 = vld [vmem:[%s102] sm:$0xf]
    %v125 = vld [vmem:[%s102 + $0x4] sm:$0xf]
    %v126 = vld [vmem:[%s107] sm:$0x1]
    %v127 = vld [vmem:[%s107 + $0x1] sm:$0x1]
    %v128 = vsub.f32 %v118, %v120
    %v129 = vsub.f32 %v119, %v121
    %v130 = vmul.f32 %v128, %v128
    %v131 = vmul.f32 %v129, %v129
    %v132 = vsub.f32 %v122, %v124
    %v133 = vsub.f32 %v123, %v125
    %v134 = vmul.f32 %v132, %v132
    %v135 = vmul.f32 %v133, %v133
    %v136 = vld [vmem:[#allocation8] sm:$0xf]
    %vm137 = vcmask 125952
    %v138 = vsel %vm137, %v130, 0.0
    %v139 = vsel %vm137, %v131, 0.0
    %v140 = vadd.f32 %v138, %v139
    %v141 = vadd.f32 %v136, %v140
    %142 = vst.msk [vmem:[#allocation8] sm:$0xf] %vm137, %v141
    %v143 = vld [vmem:[#allocation9] sm:$0xf]
    %v146 = vlaneseq
    %v147 = vshrl.u32 %v146, 7
    %v148 = vsub.s32 0, %v147
    %v149 = vrot.slane %v126, %v148
    %v150 = vlaneseq
    %v151 = vshrl.u32 %v150, 7
    %v152 = vsub.s32 0, %v151
    %v153 = vrot.slane %v127, %v152
    %v156 = vmul.f32 %v134, %v149
    %v157 = vmul.f32 %v135, %v153
    %v158 = vsel %vm137, %v156, 0.0
    %v159 = vsel %vm137, %v157, 0.0
    %v160 = vadd.f32 %v158, %v159
    %v161 = vadd.f32 %v143, %v160
    %162 = vst.msk [vmem:[#allocation9] sm:$0xf] %vm137, %v161
    %v163 = vld [vmem:[#allocation11] sm:$0x1]
    %vm164 = vcmask 122880
    %v165 = vsel %vm164, %v126, 0.0
    %v166 = vsel %vm164, %v127, 0.0
    %v167 = vadd.f32 %v165, %v166
    %v168 = vadd.f32 %v163, %v167
    %169 = vst.msk [vmem:[#allocation11] sm:$0x1] %vm164, %v168
    // Predicated region
    $region38: #{tpu_custom_call.1} parent=1 // pred_check
      _
    $region39: #{tpu_custom_call.1} parent=1 // pred_check_branch
      %171 = sbr.rel (0) target = $region41
    $region40: #{tpu_custom_call.1} parent=1 // pred_region
      %s173 = ssub.s32 64, 64
      %174 = vsyncadd [#allocation4], %s173
      %s176 = sshll.u32 [#allocation8], 4
      %s177 = int_to_ptr.vmem [resolvable:$true] %s176
      %179 = dma.vmem_to_hbm [thread:$0]  %s177, 64, %s5, [#allocation4]
    $region41: #{tpu_custom_call.1} parent=1 // pred_fallthru
      _
    // Predicated region
    $region42: #{tpu_custom_call.1} parent=1 // pred_check
      _
    $region43: #{tpu_custom_call.1} parent=1 // pred_check_branch
      %181 = sbr.rel (0) target = $region45
    $region44: #{tpu_custom_call.1} parent=1 // pred_region
      %s183 = ssub.s32 64, 64
      %184 = vsyncadd [#allocation10], %s183
      %s186 = sshll.u32 [#allocation9], 4
      %s187 = int_to_ptr.vmem [resolvable:$true] %s186
      %189 = dma.vmem_to_hbm [thread:$0]  %s187, 64, %s6, [#allocation10]
    $region45: #{tpu_custom_call.1} parent=1 // pred_fallthru
      _
    // Predicated region
    $region46: #{tpu_custom_call.1} parent=1 // pred_check
      _
    $region47: #{tpu_custom_call.1} parent=1 // pred_check_branch
      %191 = sbr.rel (0) target = $region49
    $region48: #{tpu_custom_call.1} parent=1 // pred_region
      %s193 = ssub.s32 16, 16
      %194 = vsyncadd [#allocation10], %s193
      %s196 = sshll.u32 [#allocation11], 4
      %s197 = int_to_ptr.vmem [resolvable:$true] %s196
      %199 = dma.vmem_to_hbm [thread:$0]  %s197, 16, %s7, [#allocation10]
    $region49: #{tpu_custom_call.1} parent=1 // pred_fallthru
      _
    // Predicated region
    $region50: #{tpu_custom_call.1} parent=1 // pred_check
      _
    $region51: #{tpu_custom_call.1} parent=1 // pred_check_branch
      %201 = sbr.rel (0) target = $region53
    $region52: #{tpu_custom_call.1} parent=1 // pred_region
      %202 = dma.done [#allocation4], 64
    $region53: #{tpu_custom_call.1} parent=1 // pred_fallthru
      _
    // Predicated region
    $region54: #{tpu_custom_call.1} parent=1 // pred_check
      _
    $region55: #{tpu_custom_call.1} parent=1 // pred_check_branch
      %204 = sbr.rel (0) target = $region57
    $region56: #{tpu_custom_call.1} parent=1 // pred_region
      %205 = dma.done [#allocation10], 64
    $region57: #{tpu_custom_call.1} parent=1 // pred_fallthru
      _
    // Predicated region
    $region58: #{tpu_custom_call.1} parent=1 // pred_check
      _
    $region59: #{tpu_custom_call.1} parent=1 // pred_check_branch
      %207 = sbr.rel (0) target = $region61
    $region60: #{tpu_custom_call.1} parent=1 // pred_region
      %208 = dma.done [#allocation10], 16
    $region61: #{tpu_custom_call.1} parent=1 // pred_fallthru
      _
    %209 = vsyncpa [#allocation3], 1
    %210 = vsyncpa [#allocation6], 1
    %211 = vsyncpa [#allocation4], 1
    %212 = vsyncpa [#allocation10], 1

</llo_original>
